<compile_context>
chip_gen: v6e
topology: v6e:2x2x1
jax: 0.10.0
libtpu: 0.0.40
codegen_flags: <defaults>
</compile_context>

<pallas_src>
import functools
import math

import jax
import jax.numpy as jnp
from jax.experimental import pallas as pl
from jax.experimental.pallas import tpu as pltpu

_MASK_VAL = -9.0e15   # matches the PyTorch reference's "zero_vec"
_PAD_VAL = -1.0e30    # padded-column sentinel, routed through f2 (see wrapper)


def _round_up(v, m):
    return (v + m - 1) // m * m


def _bf16_eup_supported():
    """bf16 exp is native on v6e/v7x; older gens (v5e & earlier) keep f32."""
    try:
        kind = jax.devices()[0].device_kind.lower()
    except Exception:
        return False
    return ("v6" in kind) or ("v7" in kind) or ("7x" in kind)


# --------------------------------------------------------------------------
# Kernel 1: h = x @ W   and   f = h @ [a1 | a2 | 0...]   (per row tile)
# --------------------------------------------------------------------------
def _project_kernel(x_ref, w_ref, a12_ref, h_ref, f_ref):
    h = jnp.dot(x_ref[...], w_ref[...], preferred_element_type=jnp.float32)  # (bm, f_pad)
    h_ref[...] = h.astype(h_ref.dtype)                                        # bf16
    # a12 is lane-padded to 128 columns -> lane-dense result & unmasked stores.
    f_ref[...] = jnp.dot(h, a12_ref[...], preferred_element_type=jnp.float32)


# --------------------------------------------------------------------------
# Kernel 2: tiled masked softmax(att) @ h with online softmax, then ELU
# --------------------------------------------------------------------------
def _gat_attn_kernel(f1_ref, f2_ref, adj_ref, h_ref, out_ref, m_sc, l_sc,
                     *, alpha, bn, exp_bf16, h_resident):
    j = pl.program_id(1)

    @pl.when(j == 0)
    def _():
        m_sc[...] = jnp.full_like(m_sc, jnp.float32(_MASK_VAL))
        l_sc[...] = jnp.zeros_like(l_sc)
        out_ref[...] = jnp.zeros_like(out_ref)          # f32 accumulator lives in out

    # attention logits for this (row tile, col tile): e = LeakyReLU(f1_i + f2_j)
    e = f1_ref[...] + f2_ref[...]                       # (bm,1)+(1,bn) -> (bm,bn)
    e = jnp.maximum(e, jnp.float32(alpha) * e)          # LeakyReLU, 0 < alpha < 1
    logits = jnp.where(adj_ref[...] > 0, e, jnp.float32(_MASK_VAL))
    # Padded columns need no in-kernel mask: the wrapper marks them as edges but
    # feeds f2 = _PAD_VAL, so their logit is ~alpha*_PAD_VAL << _MASK_VAL and
    # exp() underflows to exactly 0 (never enters max / denominator / output).

    # ---- online softmax update (m / l / corr stay f32) ----
    m_prev = m_sc[...]
    m_new = jnp.maximum(m_prev, jnp.max(logits, axis=1, keepdims=True))
    corr = jnp.exp(m_prev - m_new)
    shifted = logits - m_new
    if exp_bf16:
        p = jnp.exp(shifted.astype(jnp.bfloat16))       # native bf16 EUP (v6e/v7x)
        l_add = jnp.sum(p.astype(jnp.float32), axis=1, keepdims=True)
        p_mxu = p
    else:
        p = jnp.exp(shifted)                            # f32 EUP path (v5e)
        l_add = jnp.sum(p, axis=1, keepdims=True)
        p_mxu = p.astype(jnp.bfloat16)
    l_sc[...] = corr * l_sc[...] + l_add

    if h_resident:
        start = pl.multiple_of(j * bn, 128)
        hv = h_ref[pl.ds(start, bn), :]                 # slice the VMEM-resident h
    else:
        hv = h_ref[...]                                 # streamed (bn, f_pad) tile
    out_ref[...] = corr * out_ref[...] + jnp.dot(
        p_mxu, hv, preferred_element_type=jnp.float32)
    m_sc[...] = m_new

    @pl.when(j == pl.num_programs(1) - 1)
    def _():
        hp = out_ref[...] * pl.reciprocal(l_sc[...], approx=True)
        # ELU (alpha=1); only exponentiate the clamped non-positive branch.
        out_ref[...] = jnp.where(hp > 0, hp, jnp.exp(jnp.minimum(hp, 0.0)) - 1.0)


# --------------------------------------------------------------------------
# Wrapper
# --------------------------------------------------------------------------
def gat_layer(x, adj, W, a, *, alpha, tile_m=512, tile_n=1024,
              exp_bf16=None, h_resident=None):
    """GAT forward (eval, concat=True).

    x:(N,F_in), adj:(N,N) (>0 means edge), W:(F_in,F_out), a:(2*F_out,1).
    tile_m/tile_n are rounded to multiples of 128.
    """
    N, f_in = x.shape
    f_out = W.shape[1]
    f_pad = _round_up(f_out, 128)            # lane-dense h / out

    if exp_bf16 is None:
        exp_bf16 = _bf16_eup_supported()

    # ---- tile selection (multiples of 128, bm divides bn) ----
    bn = min(_round_up(tile_n, 128), _round_up(N, 128))
    bm = min(_round_up(tile_m, 128), bn)
    if N > 128:
        # keep >= 2 row tiles so the "parallel" row axis can split across both
        # v7x TensorCores even for mid-sized graphs
        bm = min(bm, _round_up((N + 1) // 2, 128))
    bm = math.gcd(bm, bn)                    # bm | bn  (both stay multiples of 128)
    n_pad_n = _round_up(N, bn)               # column padding (also kernel-1 rows)
    n_pad_m = _round_up(N, bm)               # row padding for kernel-2 row tiles

    # ---- VMEM budgeting: resident-h decision + scoped-VMEM limit ----
    bytes_ptmp = 3 * bm * bn * 4                         # live (bm,bn) f32 temporaries
    base = (2 * (bm * bn                                 # adj int8 tile (x2 buffers)
                 + bm * f_pad * 4                        # out block
                 + (bm + bn) * 4)                        # f1 / f2 tiles
            + bm * 8 + bytes_ptmp)                       # m/l scratch + temps
    h_full_bytes = n_pad_n * f_pad * 2                   # bf16 resident h
    h_tile_bytes = bn * f_pad * 2
    if h_resident is None:
        h_resident = (n_pad_n // bn > 1) and (base + 2 * h_full_bytes <= (24 << 20))
    h_bytes = 2 * (h_full_bytes if h_resident else h_tile_bytes)
    vmem_limit = int(min(60 << 20, max((base + h_bytes) * 5 // 4, 24 << 20)))

    # ---- pad operands ----
    # TODO(synk): if adj / x are reused across layers, hoist this padding and
    #             the (adj > 0) -> int8 cast out of the per-call path.
    x_p = jnp.zeros((n_pad_n, f_in), jnp.bfloat16).at[:N].set(x.astype(jnp.bfloat16))
    w_p = jnp.zeros((f_in, f_pad), jnp.bfloat16).at[:, :f_out].set(W.astype(jnp.bfloat16))
    a12 = jnp.zeros((f_pad, 128), jnp.float32)
    a12 = a12.at[:f_out, 0].set(a[:f_out, 0]).at[:f_out, 1].set(a[f_out:, 0])
    # Padded columns are marked as "edges" (1) but routed through f2 = _PAD_VAL,
    # which keeps them out of the softmax with zero per-tile masking work.
    adj_p = jnp.ones((n_pad_m, n_pad_n), jnp.int8)
    adj_p = adj_p.at[:N, :N].set((adj > 0).astype(jnp.int8))

    # ---- kernel 1: projection + fused attention-vector matmul ----
    h_pad, f = pl.pallas_call(
        _project_kernel,
        out_shape=(jax.ShapeDtypeStruct((n_pad_n, f_pad), jnp.bfloat16),
                   jax.ShapeDtypeStruct((n_pad_n, 128), jnp.float32)),
        grid=(n_pad_n // bm,),
        in_specs=[pl.BlockSpec((bm, f_in), lambda i: (i, 0)),
                  pl.BlockSpec((f_in, f_pad), lambda i: (0, 0)),
                  pl.BlockSpec((f_pad, 128), lambda i: (0, 0))],
        out_specs=(pl.BlockSpec((bm, f_pad), lambda i: (i, 0)),
                   pl.BlockSpec((bm, 128), lambda i: (i, 0))),
        compiler_params=pltpu.CompilerParams(dimension_semantics=("parallel",)),
    )(x_p, w_p, a12)

    f1 = f[:, 0:1]                                          # (n_pad_n, 1) row term
    col_ids = jnp.arange(n_pad_n)[None, :]
    f2 = jnp.where(col_ids < N, f[:, 1].reshape(1, n_pad_n),
                   jnp.float32(_PAD_VAL))                   # (1, n_pad_n) col term

    # ---- kernel 2: tiled online-softmax attention + aggregation + ELU ----
    kernel = functools.partial(_gat_attn_kernel, alpha=float(alpha), bn=bn,
                               exp_bf16=bool(exp_bf16), h_resident=bool(h_resident))
    h_spec = (pl.BlockSpec((n_pad_n, f_pad), lambda i, j: (0, 0)) if h_resident
              else pl.BlockSpec((bn, f_pad), lambda i, j: (j, 0)))
    out_pad = pl.pallas_call(
        kernel,
        out_shape=jax.ShapeDtypeStruct((n_pad_m, f_pad), jnp.float32),
        grid=(n_pad_m // bm, n_pad_n // bn),
        in_specs=[
            pl.BlockSpec((bm, 1), lambda i, j: (i, 0)),     # f1 (row term)
            pl.BlockSpec((1, bn), lambda i, j: (0, j)),     # f2 (lane-oriented col term)
            pl.BlockSpec((bm, bn), lambda i, j: (i, j)),    # adj tile (int8)
            h_spec,                                         # h (bf16): resident/streamed
        ],
        out_specs=pl.BlockSpec((bm, f_pad), lambda i, j: (i, 0)),
        scratch_shapes=[pltpu.VMEM((bm, 1), jnp.float32),   # running max m
                        pltpu.VMEM((bm, 1), jnp.float32)],  # running denom l
        compiler_params=pltpu.CompilerParams(
            dimension_semantics=("parallel", "arbitrary"),
            vmem_limit_bytes=vmem_limit),
    )(f1, f2, adj_p, h_pad)

    return out_pad[:N, :f_out]


# --------------------------------------------------------------------------
# Reference + test
# --------------------------------------------------------------------------
def _reference(x, adj, W, a, alpha):
    f_out = W.shape[1]
    h = x @ W
    e = h @ a[:f_out] + (h @ a[f_out:]).T
    e = jnp.where(e > 0, e, alpha * e)
    logits = jnp.where(adj > 0, e, _MASK_VAL)
    att = jax.nn.softmax(logits, axis=1)
    hp = att @ h
    return jnp.where(hp > 0, hp, jnp.exp(jnp.minimum(hp, 0.0)) - 1.0)


def _xavier_uniform(key, shape, gain):
    fan_in, fan_out = shape
    bound = gain * jnp.sqrt(6.0 / (fan_in + fan_out))
    return jax.random.uniform(key, shape, jnp.float32, minval=-bound, maxval=bound)


def _make_inputs(key, N, in_features, out_features):
    k_x, k_adj, k_w, k_a = jax.random.split(key, 4)
    x = jax.random.normal(k_x, (N, in_features), jnp.float32)
    adj = (jax.random.uniform(k_adj, (N, N)) > 0.5).astype(jnp.float32)
    adj = jnp.maximum(adj, jnp.eye(N, dtype=jnp.float32))
    gain = jnp.sqrt(2.0)
    W = _xavier_uniform(k_w, (in_features, out_features), gain)
    a = _xavier_uniform(k_a, (2 * out_features, 1), gain)
    return x, adj, W, a


if __name__ == "__main__":
    alpha = 0.2
    key = jax.random.PRNGKey(0)
    k1, k2 = jax.random.split(key)

    # Tolerances: bf16 x/W/h/p MXU paths, (optional) bf16 exp, approx reciprocal.
    ATOL = RTOL = 4e-2

    # Test 1: small shapes consistent with the module (N=8, 16 -> 32), single
    # tile, f32-exp path forced (safe on every TPU generation).
    x, adj, W, a = _make_inputs(k1, N=8, in_features=16, out_features=32)
    out = gat_layer(x, adj, W, a, alpha=alpha, exp_bf16=False)
    jax.block_until_ready(out)
    ref = _reference(x, adj, W, a, alpha)
    assert out.shape == ref.shape
    assert jnp.allclose(out, ref, atol=ATOL, rtol=RTOL), "mismatch vs reference (test 1)"

    # Test 2: multi-tile grid (N=300, tiles 128): online softmax across 3 column
    # tiles, independent row/column padding, VMEM-resident h, auto exp dtype.
    x2, adj2, W2, a2 = _make_inputs(k2, N=300, in_features=16, out_features=32)
    out2 = gat_layer(x2, adj2, W2, a2, alpha=alpha, tile_m=128, tile_n=128)
    jax.block_until_ready(out2)
    ref2 = _reference(x2, adj2, W2, a2, alpha)
    assert jnp.allclose(out2, ref2, atol=ATOL, rtol=RTOL), "mismatch vs reference (test 2)"

    # Test 3: same data with the streamed-h path forced (covers the non-resident
    # multi-column-tile code path).
    out3 = gat_layer(x2, adj2, W2, a2, alpha=alpha, tile_m=128, tile_n=128,
                     h_resident=False)
    jax.block_until_ready(out3)
    assert jnp.allclose(out3, ref2, atol=ATOL, rtol=RTOL), "mismatch vs reference (test 3)"

    print("KERNEL_OK")
</pallas_src>

<mosaic_0001>
module attributes {stable_mosaic.version = 11 : i64} {
  func.func @_project_kernel(%arg0: i32, %arg1: memref<128x16xbf16, #tpu.memory_space<vmem>>, %arg2: memref<16x128xbf16, #tpu.memory_space<vmem>>, %arg3: memref<128x128xf32, #tpu.memory_space<vmem>>, %arg4: memref<128x128xbf16, #tpu.memory_space<vmem>>, %arg5: memref<128x128xf32, #tpu.memory_space<vmem>>) attributes {dimension_semantics = [#tpu.dimension_semantics<parallel>], iteration_bounds = array<i64: 1>, scalar_prefetch = 0 : i64, scratch_operands = 0 : i64, tpu.core_type = #tpu.core_type<tc>, window_params = [{transform_indices = @transform_0, window_bounds = array<i64: 128, 16>}, {pipeline_mode = #tpu.pipeline_mode<synchronous>, transform_indices = @transform_1, window_bounds = array<i64: 16, 128>}, {pipeline_mode = #tpu.pipeline_mode<synchronous>, transform_indices = @transform_2, window_bounds = array<i64: 128, 128>}, {transform_indices = @transform_3, window_bounds = array<i64: 128, 128>}, {transform_indices = @transform_4, window_bounds = array<i64: 128, 128>}]} {
    %c0 = arith.constant 0 : index
    %c0_0 = arith.constant 0 : index
    %0 = vector.load %arg1[%c0, %c0_0] : memref<128x16xbf16, #tpu.memory_space<vmem>>, vector<128x16xbf16>
    %c0_1 = arith.constant 0 : index
    %c0_2 = arith.constant 0 : index
    %1 = vector.load %arg2[%c0_1, %c0_2] : memref<16x128xbf16, #tpu.memory_space<vmem>>, vector<16x128xbf16>
    %cst = arith.constant dense<0.000000e+00> : vector<128x128xf32>
    %2 = tpu.matmul %0, %1, %cst {dimension_numbers = #tpu.dot_dimension_numbers<[1], [0], [0], [1], [0, 0, 1, 1], [], []>} : vector<128x16xbf16>, vector<16x128xbf16>, vector<128x128xf32> -> vector<128x128xf32>
    %3 = arith.truncf %2 : vector<128x128xf32> to vector<128x128xbf16>
    %c0_3 = arith.constant 0 : index
    %c0_4 = arith.constant 0 : index
    %4 = vector.load %arg4[%c0_3, %c0_4] : memref<128x128xbf16, #tpu.memory_space<vmem>>, vector<128x128xbf16>
    tpu.vector_store %arg4[%c0_3, %c0_4], %3 {strides = array<i32>} : memref<128x128xbf16, #tpu.memory_space<vmem>>, vector<128x128xbf16>,
    %c0_5 = arith.constant 0 : index
    %c0_6 = arith.constant 0 : index
    %5 = vector.load %arg3[%c0_5, %c0_6] : memref<128x128xf32, #tpu.memory_space<vmem>>, vector<128x128xf32>
    %cst_7 = arith.constant dense<0.000000e+00> : vector<128x128xf32>
    %6 = tpu.matmul %2, %5, %cst_7 {dimension_numbers = #tpu.dot_dimension_numbers<[1], [0], [0], [1], [0, 0, 1, 1], [], []>} : vector<128x128xf32>, vector<128x128xf32>, vector<128x128xf32> -> vector<128x128xf32>
    %c0_8 = arith.constant 0 : index
    %c0_9 = arith.constant 0 : index
    %7 = vector.load %arg5[%c0_8, %c0_9] : memref<128x128xf32, #tpu.memory_space<vmem>>, vector<128x128xf32>
    tpu.vector_store %arg5[%c0_8, %c0_9], %6 {strides = array<i32>} : memref<128x128xf32, #tpu.memory_space<vmem>>, vector<128x128xf32>,
    return
  }
  func.func @transform_0(%arg0: i32) -> (i32, i32) {
    %c0_i32 = arith.constant 0 : i32
    %c0_i32_0 = arith.constant 0 : i32
    return %arg0, %c0_i32 : i32, i32
  }
  func.func @transform_1(%arg0: i32) -> (i32, i32) {
    %c0_i32 = arith.constant 0 : i32
    %c0_i32_0 = arith.constant 0 : i32
    %c0_i32_1 = arith.constant 0 : i32
    return %c0_i32, %c0_i32_0 : i32, i32
  }
  func.func @transform_2(%arg0: i32) -> (i32, i32) {
    %c0_i32 = arith.constant 0 : i32
    %c0_i32_0 = arith.constant 0 : i32
    %c0_i32_1 = arith.constant 0 : i32
    return %c0_i32, %c0_i32_0 : i32, i32
  }
  func.func @transform_3(%arg0: i32) -> (i32, i32) {
    %c0_i32 = arith.constant 0 : i32
    %c0_i32_0 = arith.constant 0 : i32
    return %arg0, %c0_i32 : i32, i32
  }
  func.func @transform_4(%arg0: i32) -> (i32, i32) {
    %c0_i32 = arith.constant 0 : i32
    %c0_i32_0 = arith.constant 0 : i32
    return %arg0, %c0_i32 : i32, i32
  }
}

</mosaic_0001>

<llo_original>
// kernel: tpu_custom_call.1
$region0: #{tpu_custom_call.1}
  #allocation0 [shape = 'u32[]', space=smem, size = 0x4, offset = 0x4, fixed_abs, tag = 'smem constant byte address 0x4 - core index']
  #allocation1 [shape = 'u32[144,128]{1,0:T(1,128)}', space=vmem, size = 0x12000, scoped, tag = 'internal scratch']
  %s0 = inlined_call_operand.vmem [shape: bf16[128,16], index: 0, kind: input, shape index: {}]
  %s1 = inlined_call_operand.vmem [shape: bf16[16,128], index: 1, kind: input, shape index: {}]
  %s2 = inlined_call_operand.hbm [shape: f32[128,128], index: 2, kind: input, shape index: {}]
  %s3 = inlined_call_operand.hbm [shape: bf16[128,128], index: 3, kind: output, shape index: {0}]
  %s4 = inlined_call_operand.hbm [shape: f32[128,128], index: 4, kind: output, shape index: {1}]
  %5 = xla_tuple %s3, %s4
  %s6 = sld [smem:[#allocation0]]
  $region34: #{tpu_custom_call.1} parent=0
    _
  %s8 = ssub.s32 1, %s6
  %s9 = scalar_select 0, %s8, %s6
  $region1: #{tpu_custom_call.1} parent=0
    #allocation2 [shape = 'u8[65536]{0}', space=vmem, size = 0x10000, scoped, tag = 'input window, operand 2, single buffered']
    #allocation3 [shape = 's32[1]{0}', space=sflag, size = 0x4, scoped, tag = 'scoped memory for tpu_custom_call.1']
    #allocation4 [shape = 's32[1]{0}', space=sflag, size = 0x4, scoped, tag = 'scoped memory for tpu_custom_call.1']
    #allocation5 [shape = 'u8[32768]{0}', space=vmem, size = 0x8000, scoped, tag = 'output window, operand 0, single buffered']
    #allocation6 [shape = 'u8[65536]{0}', space=vmem, size = 0x10000, scoped, tag = 'output window, operand 1, single buffered']
    #allocation7 [shape = 's32[1]{0}', space=sflag, size = 0x4, scoped, tag = 'scoped memory for tpu_custom_call.1']
    %10 = vsyncpa [#allocation3], 0
    %11 = vsyncpa [#allocation4], 0
    %12 = vsyncpa [#allocation7], 0
    // Predicated region
    $region2: #{tpu_custom_call.1} parent=1 // pred_check
      _
    $region3: #{tpu_custom_call.1} parent=1 // pred_check_branch
      %14 = sbr.rel (0) target = $region5
    $region4: #{tpu_custom_call.1} parent=1 // pred_region
      _
    $region5: #{tpu_custom_call.1} parent=1 // pred_fallthru
      _
    // Predicated region
    $region6: #{tpu_custom_call.1} parent=1 // pred_check
      _
    $region7: #{tpu_custom_call.1} parent=1 // pred_check_branch
      %16 = sbr.rel (0) target = $region9
    $region8: #{tpu_custom_call.1} parent=1 // pred_region
      _
    $region9: #{tpu_custom_call.1} parent=1 // pred_fallthru
      _
    // Predicated region
    $region10: #{tpu_custom_call.1} parent=1 // pred_check
      _
    $region11: #{tpu_custom_call.1} parent=1 // pred_check_branch
      %18 = sbr.rel (0) target = $region13
    $region12: #{tpu_custom_call.1} parent=1 // pred_region
      %s20 = ssub.s32 2048, 2048
      %21 = vsyncadd [#allocation3], %s20
      %s22 = sshll.u32 [#allocation2], 4
      %s23 = int_to_ptr.vmem [resolvable:$true] %s22
      %28 = dma.hbm_to_vmem [thread:$0]  %s2, 2048, %s23, [#allocation3], 128, 128, 8
    $region13: #{tpu_custom_call.1} parent=1 // pred_fallthru
      _
    // Predicated region
    $region14: #{tpu_custom_call.1} parent=1 // pred_check
      _
    $region15: #{tpu_custom_call.1} parent=1 // pred_check_branch
      %30 = sbr.rel (0) target = $region17
    $region16: #{tpu_custom_call.1} parent=1 // pred_region
      %31 = dma.done [#allocation3], 2048
    $region17: #{tpu_custom_call.1} parent=1 // pred_fallthru
      _
    %v33 = vld [vmem:[%s0] sm:$0xf]
    %v34 = vld [vmem:[%s0 + $0x4] sm:$0xf]
    %v35 = vld [vmem:[%s0 + $0x8] sm:$0xf]
    %v36 = vld [vmem:[%s0 + $0xc] sm:$0xf]
    %v37 = vld [vmem:[%s0 + $0x10] sm:$0xf]
    %v38 = vld [vmem:[%s0 + $0x14] sm:$0xf]
    %v39 = vld [vmem:[%s0 + $0x18] sm:$0xf]
    %v40 = vld [vmem:[%s0 + $0x1c] sm:$0xf]
    %v41 = vld [vmem:[%s0 + $0x20] sm:$0xf]
    %v42 = vld [vmem:[%s0 + $0x24] sm:$0xf]
    %v43 = vld [vmem:[%s0 + $0x28] sm:$0xf]
    %v44 = vld [vmem:[%s0 + $0x2c] sm:$0xf]
    %v45 = vld [vmem:[%s0 + $0x30] sm:$0xf]
    %v46 = vld [vmem:[%s0 + $0x34] sm:$0xf]
    %v47 = vld [vmem:[%s0 + $0x38] sm:$0xf]
    %v48 = vld [vmem:[%s0 + $0x3c] sm:$0xf]
    %v49 = vld [vmem:[%s1] sm:$0xf]
    %v50 = vld [vmem:[%s1 + $0x4] sm:$0xf]
    %v67 = vunpack.c.l.b16 %v33
    %v68 = vunpack.c.l.b16 %v34
    %v69 = vunpack.c.l.b16 %v35
    %v70 = vunpack.c.l.b16 %v36
    %v71 = vunpack.c.l.b16 %v37
    %v72 = vunpack.c.l.b16 %v38
    %v73 = vunpack.c.l.b16 %v39
    %v74 = vunpack.c.l.b16 %v40
    %v75 = vunpack.c.l.b16 %v41
    %v76 = vunpack.c.l.b16 %v42
    %v77 = vunpack.c.l.b16 %v43
    %v78 = vunpack.c.l.b16 %v44
    %v79 = vunpack.c.l.b16 %v45
    %v80 = vunpack.c.l.b16 %v46
    %v81 = vunpack.c.l.b16 %v47
    %v82 = vunpack.c.l.b16 %v48
    %v83 = vpack.c.b16 %v68, %v67
    %v84 = vpack.c.b16 %v70, %v69
    %v85 = vpack.c.b16 %v72, %v71
    %v86 = vpack.c.b16 %v74, %v73
    %v87 = vpack.c.b16 %v76, %v75
    %v88 = vpack.c.b16 %v78, %v77
    %v89 = vpack.c.b16 %v80, %v79
    %v90 = vpack.c.b16 %v82, %v81
    %v93 = vunpack.c.l.b16 %v49
    %v94 = vunpack.c.l.b16 %v50
    %v95 = vpack.c.b16 %v94, %v93
    %vm97 = vcmask 130048
    %v99 = vsel %vm97, %v83, 0
    %v102 = vsel %vm97, %v84, 0
    %v105 = vsel %vm97, %v85, 0
    %v108 = vsel %vm97, %v86, 0
    %v111 = vsel %vm97, %v87, 0
    %v114 = vsel %vm97, %v88, 0
    %v117 = vsel %vm97, %v89, 0
    %v120 = vsel %vm97, %v90, 0
    %122 = vmatprep.subr.bf16.mxu0 0
    %123 = vmatpush1.bf16.msra.mxu0 0
    %124 = vmatprep.subr.bf16.mxu0 0
    %125 = vmatpush1.bf16.msra.mxu0 0
    %126 = vmatprep.subr.bf16.mxu0 0
    %127 = vmatpush1.bf16.msra.mxu0 0
    %128 = vmatprep.subr.bf16.mxu0 0
    %129 = vmatpush1.bf16.msra.mxu0 0
    %130 = vmatprep.subr.bf16.mxu0 0
    %131 = vmatpush1.bf16.msra.mxu0 0
    %132 = vmatprep.subr.bf16.mxu0 0
    %133 = vmatpush1.bf16.msra.mxu0 0
    %134 = vmatprep.subr.bf16.mxu0 0
    %135 = vmatpush1.bf16.msra.mxu0 0
    %136 = vmatprep.subr.bf16.mxu0 0
    %137 = vmatpush1.bf16.msra.mxu0 %v95
    %138 = vmatprep.subr.bf16.mxu0 0
    %139 = vmatpush2.bf16.msra.mxu0 0
    %140 = vmatprep.subr.bf16.mxu0 0
    %141 = vmatpush2.bf16.msra.mxu0 0
    %142 = vmatprep.subr.bf16.mxu0 0
    %143 = vmatpush2.bf16.msra.mxu0 0
    %144 = vmatprep.subr.bf16.mxu0 0
    %145 = vmatpush2.bf16.msra.mxu0 0
    %146 = vmatprep.subr.bf16.mxu0 0
    %147 = vmatpush2.bf16.msra.mxu0 0
    %148 = vmatprep.subr.bf16.mxu0 0
    %149 = vmatpush2.bf16.msra.mxu0 0
    %150 = vmatprep.subr.bf16.mxu0 0
    %151 = vmatpush2.bf16.msra.mxu0 0
    %152 = vmatprep.subr.bf16.mxu0 0
    %153 = vmatpush2.bf16.msra.mxu0 0
    %154 = vmatprep.mubr.bf16.mxu0 0
    %155 = vmatmul.mubr.bf16.gmra.mxu0 %v99
    %v156 = vpop.f32.mrf.mxu0
    %v157 = vadd.f32 0.0, %v156
    %v158 = vpop.f32.mrf.mxu0
    %v159 = vpop.f32.mrf.mxu0
    %v160 = vadd.f32 0.0, %v159
    %v161 = vpop.f32.mrf.mxu0
    %162 = vmatprep.mubr.bf16.mxu0 0
    %163 = vmatmul.mubr.bf16.gmra.mxu0 %v102
    %v164 = vpop.f32.mrf.mxu0
    %v165 = vadd.f32 0.0, %v164
    %v166 = vpop.f32.mrf.mxu0
    %v167 = vpop.f32.mrf.mxu0
    %v168 = vadd.f32 0.0, %v167
    %v169 = vpop.f32.mrf.mxu0
    %170 = vmatprep.mubr.bf16.mxu0 0
    %171 = vmatmul.mubr.bf16.gmra.mxu0 %v105
    %v172 = vpop.f32.mrf.mxu0
    %v173 = vadd.f32 0.0, %v172
    %v174 = vpop.f32.mrf.mxu0
    %v175 = vpop.f32.mrf.mxu0
    %v176 = vadd.f32 0.0, %v175
    %v177 = vpop.f32.mrf.mxu0
    %178 = vmatprep.mubr.bf16.mxu0 0
    %179 = vmatmul.mubr.bf16.gmra.mxu0 %v108
    %v180 = vpop.f32.mrf.mxu0
    %v181 = vadd.f32 0.0, %v180
    %v182 = vpop.f32.mrf.mxu0
    %v183 = vpop.f32.mrf.mxu0
    %v184 = vadd.f32 0.0, %v183
    %v185 = vpop.f32.mrf.mxu0
    %186 = vmatprep.mubr.bf16.mxu0 0
    %187 = vmatmul.mubr.bf16.gmra.mxu0 %v111
    %v188 = vpop.f32.mrf.mxu0
    %v189 = vadd.f32 0.0, %v188
    %v190 = vpop.f32.mrf.mxu0
    %v191 = vpop.f32.mrf.mxu0
    %v192 = vadd.f32 0.0, %v191
    %v193 = vpop.f32.mrf.mxu0
    %194 = vmatprep.mubr.bf16.mxu0 0
    %195 = vmatmul.mubr.bf16.gmra.mxu0 %v114
    %v196 = vpop.f32.mrf.mxu0
    %v197 = vadd.f32 0.0, %v196
    %v198 = vpop.f32.mrf.mxu0
    %v199 = vpop.f32.mrf.mxu0
    %v200 = vadd.f32 0.0, %v199
    %v201 = vpop.f32.mrf.mxu0
    %202 = vmatprep.mubr.bf16.mxu0 0
    %203 = vmatmul.mubr.bf16.gmra.mxu0 %v117
    %v204 = vpop.f32.mrf.mxu0
    %v205 = vadd.f32 0.0, %v204
    %v206 = vpop.f32.mrf.mxu0
    %v207 = vpop.f32.mrf.mxu0
    %v208 = vadd.f32 0.0, %v207
    %v209 = vpop.f32.mrf.mxu0
    %210 = vmatprep.mubr.bf16.mxu0 0
    %211 = vmatmul.mubr.bf16.gmra.mxu0 %v120
    %v212 = vpop.f32.mrf.mxu0
    %v213 = vadd.f32 0.0, %v212
    %v214 = vpop.f32.mrf.mxu0
    %v215 = vpop.f32.mrf.mxu0
    %v216 = vadd.f32 0.0, %v215
    %v217 = vpop.f32.mrf.mxu0
    %218 = vdwg.mxu0
    %v219 = vpack.c.bf16 %v160, %v157
    %v220 = vpack.c.bf16 %v168, %v165
    %v221 = vpack.c.bf16 %v176, %v173
    %v222 = vpack.c.bf16 %v184, %v181
    %v223 = vpack.c.bf16 %v192, %v189
    %v224 = vpack.c.bf16 %v200, %v197
    %v225 = vpack.c.bf16 %v208, %v205
    %v226 = vpack.c.bf16 %v216, %v213
    %v235 = vunpack.c.l.b16 %v219
    %v236 = vunpack.c.h.b16 %v219
    %v237 = vunpack.c.l.b16 %v220
    %v238 = vunpack.c.h.b16 %v220
    %v239 = vunpack.c.l.b16 %v221
    %v240 = vunpack.c.h.b16 %v221
    %v241 = vunpack.c.l.b16 %v222
    %v242 = vunpack.c.h.b16 %v222
    %v243 = vunpack.c.l.b16 %v223
    %v244 = vunpack.c.h.b16 %v223
    %v245 = vunpack.c.l.b16 %v224
    %v246 = vunpack.c.h.b16 %v224
    %v247 = vunpack.c.l.b16 %v225
    %v248 = vunpack.c.h.b16 %v225
    %v249 = vunpack.c.l.b16 %v226
    %v250 = vunpack.c.h.b16 %v226
    %v251 = vpack.c.b16 %v235, %v235
    %v252 = vpack.c.b16 %v236, %v236
    %v253 = vpack.c.b16 %v237, %v237
    %v254 = vpack.c.b16 %v238, %v238
    %v255 = vpack.c.b16 %v239, %v239
    %v256 = vpack.c.b16 %v240, %v240
    %v257 = vpack.c.b16 %v241, %v241
    %v258 = vpack.c.b16 %v242, %v242
    %v259 = vpack.c.b16 %v243, %v243
    %v260 = vpack.c.b16 %v244, %v244
    %v261 = vpack.c.b16 %v245, %v245
    %v262 = vpack.c.b16 %v246, %v246
    %v263 = vpack.c.b16 %v247, %v247
    %v264 = vpack.c.b16 %v248, %v248
    %v265 = vpack.c.b16 %v249, %v249
    %v266 = vpack.c.b16 %v250, %v250
    %283 = vst [vmem:[#allocation5] sm:$0xf] %v251
    %284 = vst [vmem:[#allocation5 + $0x4] sm:$0xf] %v252
    %285 = vst [vmem:[#allocation5 + $0x8] sm:$0xf] %v253
    %286 = vst [vmem:[#allocation5 + $0xc] sm:$0xf] %v254
    %287 = vst [vmem:[#allocation5 + $0x10] sm:$0xf] %v255
    %288 = vst [vmem:[#allocation5 + $0x14] sm:$0xf] %v256
    %289 = vst [vmem:[#allocation5 + $0x18] sm:$0xf] %v257
    %290 = vst [vmem:[#allocation5 + $0x1c] sm:$0xf] %v258
    %291 = vst [vmem:[#allocation5 + $0x20] sm:$0xf] %v259
    %292 = vst [vmem:[#allocation5 + $0x24] sm:$0xf] %v260
    %293 = vst [vmem:[#allocation5 + $0x28] sm:$0xf] %v261
    %294 = vst [vmem:[#allocation5 + $0x2c] sm:$0xf] %v262
    %295 = vst [vmem:[#allocation5 + $0x30] sm:$0xf] %v263
    %296 = vst [vmem:[#allocation5 + $0x34] sm:$0xf] %v264
    %297 = vst [vmem:[#allocation5 + $0x38] sm:$0xf] %v265
    %298 = vst [vmem:[#allocation5 + $0x3c] sm:$0xf] %v266
    %v299 = vld [vmem:[#allocation2] sm:$0xff]
    %v300 = vld [vmem:[#allocation2 + $0x8] sm:$0xff]
    %v301 = vld [vmem:[#allocation2 + $0x10] sm:$0xff]
    %v302 = vld [vmem:[#allocation2 + $0x18] sm:$0xff]
    %v303 = vld [vmem:[#allocation2 + $0x20] sm:$0xff]
    %v304 = vld [vmem:[#allocation2 + $0x28] sm:$0xff]
    %v305 = vld [vmem:[#allocation2 + $0x30] sm:$0xff]
    %v306 = vld [vmem:[#allocation2 + $0x38] sm:$0xff]
    %v307 = vld [vmem:[#allocation2 + $0x40] sm:$0xff]
    %v308 = vld [vmem:[#allocation2 + $0x48] sm:$0xff]
    %v309 = vld [vmem:[#allocation2 + $0x50] sm:$0xff]
    %v310 = vld [vmem:[#allocation2 + $0x58] sm:$0xff]
    %v311 = vld [vmem:[#allocation2 + $0x60] sm:$0xff]
    %v312 = vld [vmem:[#allocation2 + $0x68] sm:$0xff]
    %v313 = vld [vmem:[#allocation2 + $0x70] sm:$0xff]
    %v314 = vld [vmem:[#allocation2 + $0x78] sm:$0xff]
    %315 = vmatprep.subr.mxu0 0.0
    %316 = vmatpush1.msra.mxu0 %v314
    %317 = vmatprep.subr.mxu0 0.0
    %318 = vmatpush1.msra.mxu0 %v313
    %319 = vmatprep.subr.mxu0 0.0
    %320 = vmatpush1.msra.mxu0 %v312
    %321 = vmatprep.subr.mxu0 0.0
    %322 = vmatpush1.msra.mxu0 %v311
    %323 = vmatprep.subr.mxu0 0.0
    %324 = vmatpush1.msra.mxu0 %v310
    %325 = vmatprep.subr.mxu0 0.0
    %326 = vmatpush1.msra.mxu0 %v309
    %327 = vmatprep.subr.mxu0 0.0
    %328 = vmatpush1.msra.mxu0 %v308
    %329 = vmatprep.subr.mxu0 0.0
    %330 = vmatpush1.msra.mxu0 %v307
    %331 = vmatprep.subr.mxu0 0.0
    %332 = vmatpush1.msra.mxu0 %v306
    %333 = vmatprep.subr.mxu0 0.0
    %334 = vmatpush1.msra.mxu0 %v305
    %335 = vmatprep.subr.mxu0 0.0
    %336 = vmatpush1.msra.mxu0 %v304
    %337 = vmatprep.subr.mxu0 0.0
    %338 = vmatpush1.msra.mxu0 %v303
    %339 = vmatprep.subr.mxu0 0.0
    %340 = vmatpush1.msra.mxu0 %v302
    %341 = vmatprep.subr.mxu0 0.0
    %342 = vmatpush1.msra.mxu0 %v301
    %343 = vmatprep.subr.mxu0 0.0
    %344 = vmatpush1.msra.mxu0 %v300
    %345 = vmatprep.subr.mxu0 0.0
    %346 = vmatpush1.msra.mxu0 %v299
    %347 = vmatprep.subr.mxu0 0.0
    %348 = vmatpush2.msra.mxu0 0.0
    %349 = vmatprep.subr.mxu0 0.0
    %350 = vmatpush2.msra.mxu0 0.0
    %351 = vmatprep.subr.mxu0 0.0
    %352 = vmatpush2.msra.mxu0 0.0
    %353 = vmatprep.subr.mxu0 0.0
    %354 = vmatpush2.msra.mxu0 0.0
    %355 = vmatprep.subr.mxu0 0.0
    %356 = vmatpush2.msra.mxu0 0.0
    %357 = vmatprep.subr.mxu0 0.0
    %358 = vmatpush2.msra.mxu0 0.0
    %359 = vmatprep.subr.mxu0 0.0
    %360 = vmatpush2.msra.mxu0 0.0
    %361 = vmatprep.subr.mxu0 0.0
    %362 = vmatpush2.msra.mxu0 0.0
    %363 = vmatprep.subr.mxu0 0.0
    %364 = vmatpush2.msra.mxu0 0.0
    %365 = vmatprep.subr.mxu0 0.0
    %366 = vmatpush2.msra.mxu0 0.0
    %367 = vmatprep.subr.mxu0 0.0
    %368 = vmatpush2.msra.mxu0 0.0
    %369 = vmatprep.subr.mxu0 0.0
    %370 = vmatpush2.msra.mxu0 0.0
    %371 = vmatprep.subr.mxu0 0.0
    %372 = vmatpush2.msra.mxu0 0.0
    %373 = vmatprep.subr.mxu0 0.0
    %374 = vmatpush2.msra.mxu0 0.0
    %375 = vmatprep.subr.mxu0 0.0
    %376 = vmatpush2.msra.mxu0 0.0
    %377 = vmatprep.subr.mxu0 0.0
    %378 = vmatpush2.msra.mxu0 0.0
    %379 = vmatprep.mubr.f32.mxu0 0.0
    %380 = vmatmul.mubr.f32.gmra.mxu0 %v157
    %v381 = vpop.f32.mrf.mxu0
    %v382 = vadd.f32 0.0, %v381
    %v383 = vpop.f32.mrf.mxu0
    %384 = vmatprep.mubr.f32.mxu0 0.0
    %385 = vmatmul.mubr.f32.gmra.mxu0 %v160
    %v386 = vpop.f32.mrf.mxu0
    %v387 = vadd.f32 0.0, %v386
    %v388 = vpop.f32.mrf.mxu0
    %389 = vmatprep.mubr.f32.mxu0 0.0
    %390 = vmatmul.mubr.f32.gmra.mxu0 %v165
    %v391 = vpop.f32.mrf.mxu0
    %v392 = vadd.f32 0.0, %v391
    %v393 = vpop.f32.mrf.mxu0
    %394 = vmatprep.mubr.f32.mxu0 0.0
    %395 = vmatmul.mubr.f32.gmra.mxu0 %v168
    %v396 = vpop.f32.mrf.mxu0
    %v397 = vadd.f32 0.0, %v396
    %v398 = vpop.f32.mrf.mxu0
    %399 = vmatprep.mubr.f32.mxu0 0.0
    %400 = vmatmul.mubr.f32.gmra.mxu0 %v173
    %v401 = vpop.f32.mrf.mxu0
    %v402 = vadd.f32 0.0, %v401
    %v403 = vpop.f32.mrf.mxu0
    %404 = vmatprep.mubr.f32.mxu0 0.0
    %405 = vmatmul.mubr.f32.gmra.mxu0 %v176
    %v406 = vpop.f32.mrf.mxu0
    %v407 = vadd.f32 0.0, %v406
    %v408 = vpop.f32.mrf.mxu0
    %409 = vmatprep.mubr.f32.mxu0 0.0
    %410 = vmatmul.mubr.f32.gmra.mxu0 %v181
    %v411 = vpop.f32.mrf.mxu0
    %v412 = vadd.f32 0.0, %v411
    %v413 = vpop.f32.mrf.mxu0
    %414 = vmatprep.mubr.f32.mxu0 0.0
    %415 = vmatmul.mubr.f32.gmra.mxu0 %v184
    %v416 = vpop.f32.mrf.mxu0
    %v417 = vadd.f32 0.0, %v416
    %v418 = vpop.f32.mrf.mxu0
    %419 = vmatprep.mubr.f32.mxu0 0.0
    %420 = vmatmul.mubr.f32.gmra.mxu0 %v189
    %v421 = vpop.f32.mrf.mxu0
    %v422 = vadd.f32 0.0, %v421
    %v423 = vpop.f32.mrf.mxu0
    %424 = vmatprep.mubr.f32.mxu0 0.0
    %425 = vmatmul.mubr.f32.gmra.mxu0 %v192
    %v426 = vpop.f32.mrf.mxu0
    %v427 = vadd.f32 0.0, %v426
    %v428 = vpop.f32.mrf.mxu0
    %429 = vmatprep.mubr.f32.mxu0 0.0
    %430 = vmatmul.mubr.f32.gmra.mxu0 %v197
    %v431 = vpop.f32.mrf.mxu0
    %v432 = vadd.f32 0.0, %v431
    %v433 = vpop.f32.mrf.mxu0
    %434 = vmatprep.mubr.f32.mxu0 0.0
    %435 = vmatmul.mubr.f32.gmra.mxu0 %v200
    %v436 = vpop.f32.mrf.mxu0
    %v437 = vadd.f32 0.0, %v436
    %v438 = vpop.f32.mrf.mxu0
    %439 = vmatprep.mubr.f32.mxu0 0.0
    %440 = vmatmul.mubr.f32.gmra.mxu0 %v205
    %v441 = vpop.f32.mrf.mxu0
    %v442 = vadd.f32 0.0, %v441
    %v443 = vpop.f32.mrf.mxu0
    %444 = vmatprep.mubr.f32.mxu0 0.0
    %445 = vmatmul.mubr.f32.gmra.mxu0 %v208
    %v446 = vpop.f32.mrf.mxu0
    %v447 = vadd.f32 0.0, %v446
    %v448 = vpop.f32.mrf.mxu0
    %449 = vmatprep.mubr.f32.mxu0 0.0
    %450 = vmatmul.mubr.f32.gmra.mxu0 %v213
    %v451 = vpop.f32.mrf.mxu0
    %v452 = vadd.f32 0.0, %v451
    %v453 = vpop.f32.mrf.mxu0
    %454 = vmatprep.mubr.f32.mxu0 0.0
    %455 = vmatmul.mubr.f32.gmra.mxu0 %v216
    %v456 = vpop.f32.mrf.mxu0
    %v457 = vadd.f32 0.0, %v456
    %v458 = vpop.f32.mrf.mxu0
    %459 = vdwg.mxu0
    %460 = vst [vmem:[#allocation6] sm:$0xff] %v382
    %461 = vst [vmem:[#allocation6 + $0x8] sm:$0xff] %v387
    %462 = vst [vmem:[#allocation6 + $0x10] sm:$0xff] %v392
    %463 = vst [vmem:[#allocation6 + $0x18] sm:$0xff] %v397
    %464 = vst [vmem:[#allocation6 + $0x20] sm:$0xff] %v402
    %465 = vst [vmem:[#allocation6 + $0x28] sm:$0xff] %v407
    %466 = vst [vmem:[#allocation6 + $0x30] sm:$0xff] %v412
    %467 = vst [vmem:[#allocation6 + $0x38] sm:$0xff] %v417
    %468 = vst [vmem:[#allocation6 + $0x40] sm:$0xff] %v422
    %469 = vst [vmem:[#allocation6 + $0x48] sm:$0xff] %v427
    %470 = vst [vmem:[#allocation6 + $0x50] sm:$0xff] %v432
    %471 = vst [vmem:[#allocation6 + $0x58] sm:$0xff] %v437
    %472 = vst [vmem:[#allocation6 + $0x60] sm:$0xff] %v442
    %473 = vst [vmem:[#allocation6 + $0x68] sm:$0xff] %v447
    %474 = vst [vmem:[#allocation6 + $0x70] sm:$0xff] %v452
    %475 = vst [vmem:[#allocation6 + $0x78] sm:$0xff] %v457
    // Predicated region
    $region18: #{tpu_custom_call.1} parent=1 // pred_check
      _
    $region19: #{tpu_custom_call.1} parent=1 // pred_check_branch
      %477 = sbr.rel (0) target = $region21
    $region20: #{tpu_custom_call.1} parent=1 // pred_region
      %s479 = ssub.s32 1024, 1024
      %480 = vsyncadd [#allocation4], %s479
      %s481 = sshll.u32 [#allocation5], 4
      %s482 = int_to_ptr.vmem [resolvable:$true] %s481
      %487 = dma.vmem_to_hbm [thread:$0]  %s482, 1024, %s3, [#allocation4], 64, 64, 4
    $region21: #{tpu_custom_call.1} parent=1 // pred_fallthru
      _
    // Predicated region
    $region22: #{tpu_custom_call.1} parent=1 // pred_check
      _
    $region23: #{tpu_custom_call.1} parent=1 // pred_check_branch
      %489 = sbr.rel (0) target = $region25
    $region24: #{tpu_custom_call.1} parent=1 // pred_region
      %s491 = ssub.s32 2048, 2048
      %492 = vsyncadd [#allocation7], %s491
      %s493 = sshll.u32 [#allocation6], 4
      %s494 = int_to_ptr.vmem [resolvable:$true] %s493
      %499 = dma.vmem_to_hbm [thread:$0]  %s494, 2048, %s4, [#allocation7], 128, 128, 8
    $region25: #{tpu_custom_call.1} parent=1 // pred_fallthru
      _
    // Predicated region
    $region26: #{tpu_custom_call.1} parent=1 // pred_check
      _
    $region27: #{tpu_custom_call.1} parent=1 // pred_check_branch
      %501 = sbr.rel (0) target = $region29
    $region28: #{tpu_custom_call.1} parent=1 // pred_region
      %502 = dma.done [#allocation4], 1024
    $region29: #{tpu_custom_call.1} parent=1 // pred_fallthru
      _
    // Predicated region
    $region30: #{tpu_custom_call.1} parent=1 // pred_check
      _
    $region31: #{tpu_custom_call.1} parent=1 // pred_check_branch
      %504 = sbr.rel (0) target = $region33
    $region32: #{tpu_custom_call.1} parent=1 // pred_region
      %505 = dma.done [#allocation7], 2048
    $region33: #{tpu_custom_call.1} parent=1 // pred_fallthru
      _
    %506 = vsyncpa [#allocation3], 1
    %507 = vsyncpa [#allocation4], 1
    %508 = vsyncpa [#allocation7], 1

</llo_original>
